<compile_context>
chip_gen: v7x
topology: tpu7x:2x2x1
jax: 0.10.0
libtpu: 0.0.40
codegen_flags: <defaults>
</compile_context>

<pallas_src>
import math

import jax
import jax.numpy as jnp
from jax.experimental import pallas as pl
from jax.experimental.pallas import tpu as pltpu  # not needed at this size (no grid / TPU params)

# ----------------------------- hyper-parameters ------------------------------
N = 2                    # batch
SEQ = 8                  # sequence length
EMBED = 32               # embed_size
HEADS = 4
HEAD_DIM = EMBED // HEADS
FWD_EXP = 4
FF = FWD_EXP * EMBED     # 128
EPS = 1e-5               # nn.LayerNorm default eps
NEG_INF = -1e20          # masked_fill value in the reference code
SCALE = 1.0 / math.sqrt(EMBED)

TOK = N * SEQ            # 16 token rows (batch-major)
GRP = HEADS * N * SEQ    # 64 folded (head, batch, key) columns
PAD_IN = 128             # lane-dense packed-input width (>= 3*EMBED)
SLAB_W = 128             # lane width of the packed bias / LN-param slab


def _layer_norm(x, gamma, beta):
    mean = jnp.mean(x, axis=-1, keepdims=True)
    var = jnp.mean((x - mean) ** 2, axis=-1, keepdims=True)   # biased, like torch
    return (x - mean) * jax.lax.rsqrt(var + EPS) * gamma + beta


# ----------------------------- Pallas kernel ---------------------------------
# Single invocation, no grid: every ref is the whole (tiny) array in VMEM.
def transformer_block_kernel(x_ref, mb_ref, wa_ref, wb_ref, mkg_ref, bias_ref,
                             o_ref):
    x = x_ref[...]                                  # (TOK, 128): [v | k | q | 0]
    q_in = x[:, 2 * EMBED:3 * EMBED]                # residual input   (TOK, E)

    # ---- fused V/K/Q projection: one MXU pass (q block pre-scaled on host) --
    proj = jnp.dot(x, wa_ref[:, 0:3 * EMBED],
                   preferred_element_type=jnp.float32)          # (TOK, 3E)
    vp = proj[:, 0:EMBED]
    kp = proj[:, EMBED:2 * EMBED]
    qp = proj[:, 2 * EMBED:3 * EMBED]

    # ---- block-diagonal multi-head attention (no reshape / transpose) -------
    # folded column index c = h*(N*S) + n*S + k
    head_mask = mkg_ref[:, 0:EMBED]                 # (GRP, E) zero other heads
    gmat = mkg_ref[:, EMBED:EMBED + GRP]            # (GRP, GRP) same-(h,n) group
    k_rows = jnp.concatenate([kp] * HEADS, axis=0) * head_mask  # (GRP, E)
    v_rows = jnp.concatenate([vp] * HEADS, axis=0) * head_mask  # (GRP, E)

    energy = jnp.einsum('te,ce->tc', qp, k_rows,
                        preferred_element_type=jnp.float32)     # (TOK, GRP)
    energy = energy + mb_ref[...]                   # key padding + cross-batch

    m = jnp.max(energy, axis=-1, keepdims=True)     # same shift for every group
    p = jnp.exp(energy - m)
    denom = jnp.dot(p, gmat, preferred_element_type=jnp.float32)
    # exact divide (no approx reciprocal); +1e-30 only turns the all-masked
    # cross-batch groups' 0/0 into 0 (they contribute nothing to ctx).
    attn_w = p / (denom + 1e-30)

    ctx = jnp.dot(attn_w, v_rows,
                  preferred_element_type=jnp.float32)           # (TOK, E)

    # ---- fc_out + residual + LN + ReLU-MLP + residual + LN ------------------
    slab = bias_ref[...]                            # (8, 128) packed params
    bf1 = slab[0:1, 0:FF]
    bo  = slab[1:2, 0:EMBED]
    g1  = slab[2:3, 0:EMBED]
    b1  = slab[3:4, 0:EMBED]
    bf2 = slab[4:5, 0:EMBED]
    g2  = slab[5:6, 0:EMBED]
    b2  = slab[6:7, 0:EMBED]

    wf1_t = wb_ref[0:EMBED, :]                      # (E, FF)
    wo_t  = wb_ref[EMBED:2 * EMBED, 0:EMBED]        # (E, E)
    wf2_t = wa_ref[:, 3 * EMBED:3 * EMBED + EMBED]  # (FF, E)

    attn = jnp.dot(ctx, wo_t, preferred_element_type=jnp.float32) + bo
    # TODO(synk): nn.Dropout treated as identity (eval-mode semantics).
    h1 = _layer_norm(attn + q_in, g1, b1)

    ff = jnp.maximum(
        jnp.dot(h1, wf1_t, preferred_element_type=jnp.float32) + bf1, 0.0)
    y = jnp.dot(ff, wf2_t, preferred_element_type=jnp.float32) + bf2
    o_ref[...] = _layer_norm(y + h1, g2, b2)


# ------------------------------- wrapper -------------------------------------
def build_mask_bias(mask):
    """(N,1,S) 0/1 mask -> (TOK, GRP) additive 0 / -1e20 bias in the folded
    c = h*(N*S) + n*S + k column layout (also masks cross-batch columns)."""
    n_of_row = jnp.arange(TOK) // SEQ
    c = jnp.arange(GRP)
    n_of_col = (c % (N * SEQ)) // SEQ
    k_of_col = c % SEQ
    key_ok = mask[:, 0, :] != 0                                  # (N, S)
    col_ok = key_ok[n_of_col, k_of_col]                          # (GRP,)
    allow = (n_of_row[:, None] == n_of_col[None, :]) & col_ok[None, :]
    return jnp.where(allow, 0.0, NEG_INF).astype(jnp.float32)


def transformer_block(value, key, query, mask, packed):
    w_a, w_b, mk_g, bias_slab = packed
    n, s, e = query.shape
    # lane-dense (N*S, 128) input slab: [v | k | q | zero-pad]
    xin = jnp.concatenate([value, key, query], axis=-1).reshape(n * s, 3 * e)
    xin = jnp.pad(xin, ((0, 0), (0, PAD_IN - 3 * e)))
    mbias = build_mask_bias(mask)                                # (TOK, GRP)

    out = pl.pallas_call(
        transformer_block_kernel,
        out_shape=jax.ShapeDtypeStruct((n * s, e), jnp.float32),
    )(xin, mbias, w_a, w_b, mk_g, bias_slab)
    return out.reshape(n, s, e)


# --------------------------- parameter handling ------------------------------
def init_params(key):
    ks = jax.random.split(key, 13)
    w = lambda k, shape, s=0.1: jax.random.normal(k, shape, jnp.float32) * s
    return dict(
        wv=w(ks[0], (HEAD_DIM, HEAD_DIM)),      # nn.Linear(head_dim, head_dim, bias=False)
        wk=w(ks[1], (HEAD_DIM, HEAD_DIM)),
        wq=w(ks[2], (HEAD_DIM, HEAD_DIM)),
        wo=w(ks[3], (EMBED, EMBED)),            # fc_out weight
        bo=w(ks[4], (EMBED,)),                  # fc_out bias
        g1=1.0 + w(ks[5], (EMBED,)),            # norm1 gamma
        b1=w(ks[6], (EMBED,)),                  # norm1 beta
        wf1=w(ks[7], (FF, EMBED)),              # ff linear 1
        bf1=w(ks[8], (FF,)),
        wf2=w(ks[9], (EMBED, FF)),              # ff linear 2
        bf2=w(ks[10], (EMBED,)),
        g2=1.0 + w(ks[11], (EMBED,)),           # norm2 gamma
        b2=w(ks[12], (EMBED,)),                 # norm2 beta
    )


def _blockdiag3(a, b, c):
    e = a.shape[0]
    out = jnp.zeros((3 * e, 3 * e), jnp.float32)
    out = out.at[0:e, 0:e].set(a)
    out = out.at[e:2 * e, e:2 * e].set(b)
    out = out.at[2 * e:3 * e, 2 * e:3 * e].set(c)
    return out


def pack_params(p):
    # Per-head nn.Linear on (., E): x @ kron(I_H, W.T) applies W to every head.
    eye = jnp.eye(HEADS, dtype=jnp.float32)
    bd = lambda w: jnp.kron(eye, w.T)                              # (E, E)
    # Fused V/K/Q weight (3E,3E) with 1/sqrt(E) folded into the q block,
    # zero-padded to 128 input rows; fc2 weight packed into the same slab.
    w_vkq = _blockdiag3(bd(p['wv']), bd(p['wk']), bd(p['wq']) * SCALE)
    w_vkq = jnp.pad(w_vkq, ((0, PAD_IN - 3 * EMBED), (0, 0)))      # (128, 3E)
    w_a = jnp.concatenate([w_vkq, p['wf2'].T], axis=1)             # (128, 128)

    wo_pad = jnp.pad(p['wo'].T, ((0, 0), (0, FF - EMBED)))         # (E, FF)
    w_b = jnp.concatenate([p['wf1'].T, wo_pad], axis=0)            # (2E, FF)

    # Static attention-layout constants: head mask for the tiled k/v rows and
    # the same-(head,batch)-group matrix used for the softmax denominator.
    c = jnp.arange(GRP)
    head_of_c = c // (N * SEQ)
    head_of_e = jnp.arange(EMBED) // HEAD_DIM
    head_mask = (head_of_c[:, None] == head_of_e[None, :]).astype(jnp.float32)
    grp = c // SEQ
    gmat = (grp[:, None] == grp[None, :]).astype(jnp.float32)
    mk_g = jnp.concatenate(
        [head_mask, gmat, jnp.zeros((GRP, PAD_IN - EMBED - GRP), jnp.float32)],
        axis=1)                                                    # (64, 128)

    def row(v):
        return jnp.pad(v, (0, SLAB_W - v.shape[0]))[None, :]
    bias_slab = jnp.concatenate([
        row(p['bf1']), row(p['bo']), row(p['g1']), row(p['b1']),
        row(p['bf2']), row(p['g2']), row(p['b2']),
        jnp.zeros((1, SLAB_W), jnp.float32)], axis=0)              # (8, 128)
    return w_a, w_b, mk_g, bias_slab


# ---------------------------- pure-JAX reference -----------------------------
def ref_transformer_block(value, key, query, mask, p):
    n, s, e = query.shape
    vh = value.reshape(n, s, HEADS, HEAD_DIM)
    kh = key.reshape(n, s, HEADS, HEAD_DIM)
    qh = query.reshape(n, s, HEADS, HEAD_DIM)
    vh = jnp.einsum('nshd,od->nsho', vh, p['wv'])
    kh = jnp.einsum('nshd,od->nsho', kh, p['wk'])
    qh = jnp.einsum('nshd,od->nsho', qh, p['wq'])
    energy = jnp.einsum('nqhd,nkhd->nhqk', qh, kh)
    energy = jnp.where(mask[:, :, None, :] == 0, NEG_INF, energy)
    attn = jax.nn.softmax(energy / jnp.sqrt(jnp.float32(e)), axis=3)
    out = jnp.einsum('nhqk,nkhd->nqhd', attn, vh).reshape(n, s, e)
    out = out @ p['wo'].T + p['bo']
    h1 = _layer_norm(out + query, p['g1'], p['b1'])
    ff = jnp.maximum(h1 @ p['wf1'].T + p['bf1'], 0.0) @ p['wf2'].T + p['bf2']
    return _layer_norm(ff + h1, p['g2'], p['b2'])


# --------------------------------- main ---------------------------------------
if __name__ == "__main__":
    root = jax.random.PRNGKey(0)
    k_v, k_k, k_q, k_p = jax.random.split(root, 4)

    value = jax.random.normal(k_v, (N, SEQ, EMBED), jnp.float32)
    key_in = jax.random.normal(k_k, (N, SEQ, EMBED), jnp.float32)
    query = jax.random.normal(k_q, (N, SEQ, EMBED), jnp.float32)
    # padding mask: mask out the last key position of batch element 1
    mask = jnp.ones((N, 1, SEQ), jnp.float32).at[1, 0, SEQ - 1].set(0.0)

    params = init_params(k_p)
    packed = pack_params(params)

    out = jax.block_until_ready(transformer_block(value, key_in, query, mask,
                                                  packed))

    ref = ref_transformer_block(value, key_in, query, mask, params)
    assert out.shape == (N, SEQ, EMBED)
    assert bool(jnp.all(jnp.isfinite(out)))
    # softmax normalization is now exact; tolerance only covers matmul-precision
    # differences between the in-kernel MXU path and XLA's default f32 matmuls.
    err = float(jnp.max(jnp.abs(out - ref)))
    assert bool(jnp.allclose(out, ref, atol=2e-3, rtol=2e-3)), err

    print("KERNEL_OK")
</pallas_src>

<mosaic_0001>
module attributes {stable_mosaic.version = 11 : i64} {
  func.func @transformer_block_kernel(%arg0: memref<16x128xf32, #tpu.memory_space<vmem>>, %arg1: memref<16x64xf32, #tpu.memory_space<vmem>>, %arg2: memref<128x128xf32, #tpu.memory_space<vmem>>, %arg3: memref<64x128xf32, #tpu.memory_space<vmem>>, %arg4: memref<64x128xf32, #tpu.memory_space<vmem>>, %arg5: memref<8x128xf32, #tpu.memory_space<vmem>>, %arg6: memref<16x32xf32, #tpu.memory_space<vmem>>) attributes {dimension_semantics = [], scalar_prefetch = 0 : i64, scratch_operands = 0 : i64, tpu.core_type = #tpu.core_type<tc>} {
    %c0 = arith.constant 0 : index
    %c0_0 = arith.constant 0 : index
    %0 = vector.load %arg0[%c0, %c0_0] : memref<16x128xf32, #tpu.memory_space<vmem>>, vector<16x128xf32>
    %1 = vector.extract_strided_slice %0 {offsets = [0, 64], sizes = [16, 32], strides = [1, 1]} : vector<16x128xf32> to vector<16x32xf32>
    %c0_1 = arith.constant 0 : index
    %c0_2 = arith.constant 0 : index
    %2 = vector.load %arg2[%c0_1, %c0_2] : memref<128x128xf32, #tpu.memory_space<vmem>>, vector<128x96xf32>
    %cst = arith.constant dense<0.000000e+00> : vector<16x96xf32>
    %3 = tpu.matmul %0, %2, %cst {dimension_numbers = #tpu.dot_dimension_numbers<[1], [0], [0], [1], [0, 0, 1, 1], [], []>} : vector<16x128xf32>, vector<128x96xf32>, vector<16x96xf32> -> vector<16x96xf32>
    %4 = vector.extract_strided_slice %3 {offsets = [0, 0], sizes = [16, 32], strides = [1, 1]} : vector<16x96xf32> to vector<16x32xf32>
    %5 = vector.extract_strided_slice %3 {offsets = [0, 32], sizes = [16, 32], strides = [1, 1]} : vector<16x96xf32> to vector<16x32xf32>
    %6 = vector.extract_strided_slice %3 {offsets = [0, 64], sizes = [16, 32], strides = [1, 1]} : vector<16x96xf32> to vector<16x32xf32>
    %c0_3 = arith.constant 0 : index
    %c0_4 = arith.constant 0 : index
    %7 = vector.load %arg4[%c0_3, %c0_4] : memref<64x128xf32, #tpu.memory_space<vmem>>, vector<64x32xf32>
    %c0_5 = arith.constant 0 : index
    %c32 = arith.constant 32 : index
    %8 = vector.load %arg4[%c0_5, %c32] : memref<64x128xf32, #tpu.memory_space<vmem>>, vector<64x64xf32>
    %9 = tpu.concatenate %5, %5, %5, %5 in 0 : vector<16x32xf32>, vector<16x32xf32>, vector<16x32xf32>, vector<16x32xf32> -> vector<64x32xf32>
    %10 = arith.mulf %9, %7 : vector<64x32xf32>
    %11 = tpu.concatenate %4, %4, %4, %4 in 0 : vector<16x32xf32>, vector<16x32xf32>, vector<16x32xf32>, vector<16x32xf32> -> vector<64x32xf32>
    %12 = arith.mulf %11, %7 : vector<64x32xf32>
    "tpu.trace_start"() <{level = 10 : i32, message = "te,ce->tc"}> : () -> ()
    %cst_6 = arith.constant dense<0.000000e+00> : vector<16x64xf32>
    %13 = tpu.matmul %6, %10, %cst_6 {dimension_numbers = #tpu.dot_dimension_numbers<[1], [1], [0], [0], [0, 0, 1, 0], [], []>} : vector<16x32xf32>, vector<64x32xf32>, vector<16x64xf32> -> vector<16x64xf32>
    "tpu.trace_stop"() : () -> ()
    %c0_7 = arith.constant 0 : index
    %c0_8 = arith.constant 0 : index
    %14 = vector.load %arg1[%c0_7, %c0_8] : memref<16x64xf32, #tpu.memory_space<vmem>>, vector<16x64xf32>
    %15 = arith.addf %13, %14 : vector<16x64xf32>
    %cst_9 = arith.constant dense<0xFF800000> : vector<16xf32>
    %16 = vector.multi_reduction <maximumf>, %15, %cst_9 [1] : vector<16x64xf32> to vector<16xf32>
    %17 = vector.shape_cast %16 : vector<16xf32> to vector<16x1xf32>
    %18 = vector.broadcast %17 : vector<16x1xf32> to vector<16x64xf32>
    %19 = arith.subf %15, %18 : vector<16x64xf32>
    %20 = math.exp %19 : vector<16x64xf32>
    %cst_10 = arith.constant dense<0.000000e+00> : vector<16x64xf32>
    %21 = tpu.matmul %20, %8, %cst_10 {dimension_numbers = #tpu.dot_dimension_numbers<[1], [0], [0], [1], [0, 0, 1, 1], [], []>} : vector<16x64xf32>, vector<64x64xf32>, vector<16x64xf32> -> vector<16x64xf32>
    %cst_11 = arith.constant 1.000000e-30 : f32
    %22 = vector.broadcast %cst_11 : f32 to vector<16x64xf32>
    %23 = arith.addf %21, %22 : vector<16x64xf32>
    %24 = arith.divf %20, %23 : vector<16x64xf32>
    %cst_12 = arith.constant dense<0.000000e+00> : vector<16x32xf32>
    %25 = tpu.matmul %24, %12, %cst_12 {dimension_numbers = #tpu.dot_dimension_numbers<[1], [0], [0], [1], [0, 0, 1, 1], [], []>} : vector<16x64xf32>, vector<64x32xf32>, vector<16x32xf32> -> vector<16x32xf32>
    %c0_13 = arith.constant 0 : index
    %c0_14 = arith.constant 0 : index
    %26 = vector.load %arg5[%c0_13, %c0_14] : memref<8x128xf32, #tpu.memory_space<vmem>>, vector<8x128xf32>
    %27 = vector.extract_strided_slice %26 {offsets = [0, 0], sizes = [1, 128], strides = [1, 1]} : vector<8x128xf32> to vector<1x128xf32>
    %28 = vector.extract_strided_slice %26 {offsets = [1, 0], sizes = [1, 32], strides = [1, 1]} : vector<8x128xf32> to vector<1x32xf32>
    %29 = vector.extract_strided_slice %26 {offsets = [2, 0], sizes = [1, 32], strides = [1, 1]} : vector<8x128xf32> to vector<1x32xf32>
    %30 = vector.extract_strided_slice %26 {offsets = [3, 0], sizes = [1, 32], strides = [1, 1]} : vector<8x128xf32> to vector<1x32xf32>
    %31 = vector.extract_strided_slice %26 {offsets = [4, 0], sizes = [1, 32], strides = [1, 1]} : vector<8x128xf32> to vector<1x32xf32>
    %32 = vector.extract_strided_slice %26 {offsets = [5, 0], sizes = [1, 32], strides = [1, 1]} : vector<8x128xf32> to vector<1x32xf32>
    %33 = vector.extract_strided_slice %26 {offsets = [6, 0], sizes = [1, 32], strides = [1, 1]} : vector<8x128xf32> to vector<1x32xf32>
    %c0_15 = arith.constant 0 : index
    %c0_16 = arith.constant 0 : index
    %34 = vector.load %arg3[%c0_15, %c0_16] : memref<64x128xf32, #tpu.memory_space<vmem>>, vector<32x128xf32>
    %c32_17 = arith.constant 32 : index
    %c0_18 = arith.constant 0 : index
    %35 = vector.load %arg3[%c32_17, %c0_18] : memref<64x128xf32, #tpu.memory_space<vmem>>, vector<32x32xf32>
    %c0_19 = arith.constant 0 : index
    %c96 = arith.constant 96 : index
    %36 = vector.load %arg2[%c0_19, %c96] : memref<128x128xf32, #tpu.memory_space<vmem>>, vector<128x32xf32>
    %cst_20 = arith.constant dense<0.000000e+00> : vector<16x32xf32>
    %37 = tpu.matmul %25, %35, %cst_20 {dimension_numbers = #tpu.dot_dimension_numbers<[1], [0], [0], [1], [0, 0, 1, 1], [], []>} : vector<16x32xf32>, vector<32x32xf32>, vector<16x32xf32> -> vector<16x32xf32>
    %38 = vector.broadcast %28 : vector<1x32xf32> to vector<16x32xf32>
    %39 = arith.addf %37, %38 : vector<16x32xf32>
    %40 = arith.addf %39, %1 : vector<16x32xf32>
    %cst_21 = arith.constant dense<0.000000e+00> : vector<16xf32>
    %41 = vector.multi_reduction <add>, %40, %cst_21 [1] : vector<16x32xf32> to vector<16xf32>
    %42 = vector.shape_cast %41 : vector<16xf32> to vector<16x1xf32>
    %cst_22 = arith.constant 3.200000e+01 : f32
    %43 = vector.broadcast %cst_22 : f32 to vector<16x1xf32>
    %44 = arith.divf %42, %43 : vector<16x1xf32>
    %45 = vector.broadcast %44 : vector<16x1xf32> to vector<16x32xf32>
    %46 = arith.subf %40, %45 : vector<16x32xf32>
    %47 = arith.mulf %46, %46 : vector<16x32xf32>
    %cst_23 = arith.constant dense<0.000000e+00> : vector<16xf32>
    %48 = vector.multi_reduction <add>, %47, %cst_23 [1] : vector<16x32xf32> to vector<16xf32>
    %49 = vector.shape_cast %48 : vector<16xf32> to vector<16x1xf32>
    %cst_24 = arith.constant 3.200000e+01 : f32
    %50 = vector.broadcast %cst_24 : f32 to vector<16x1xf32>
    %51 = arith.divf %49, %50 : vector<16x1xf32>
    %52 = vector.broadcast %44 : vector<16x1xf32> to vector<16x32xf32>
    %53 = arith.subf %40, %52 : vector<16x32xf32>
    %cst_25 = arith.constant 9.99999974E-6 : f32
    %54 = vector.broadcast %cst_25 : f32 to vector<16x1xf32>
    %55 = arith.addf %51, %54 : vector<16x1xf32>
    %56 = math.rsqrt %55 : vector<16x1xf32>
    %57 = vector.broadcast %56 : vector<16x1xf32> to vector<16x32xf32>
    %58 = arith.mulf %53, %57 : vector<16x32xf32>
    %59 = vector.broadcast %29 : vector<1x32xf32> to vector<16x32xf32>
    %60 = arith.mulf %58, %59 : vector<16x32xf32>
    %61 = vector.broadcast %30 : vector<1x32xf32> to vector<16x32xf32>
    %62 = arith.addf %60, %61 : vector<16x32xf32>
    %cst_26 = arith.constant dense<0.000000e+00> : vector<16x128xf32>
    %63 = tpu.matmul %62, %34, %cst_26 {dimension_numbers = #tpu.dot_dimension_numbers<[1], [0], [0], [1], [0, 0, 1, 1], [], []>} : vector<16x32xf32>, vector<32x128xf32>, vector<16x128xf32> -> vector<16x128xf32>
    %64 = vector.broadcast %27 : vector<1x128xf32> to vector<16x128xf32>
    %65 = arith.addf %63, %64 : vector<16x128xf32>
    %cst_27 = arith.constant 0.000000e+00 : f32
    %66 = vector.broadcast %cst_27 : f32 to vector<16x128xf32>
    %67 = arith.maximumf %65, %66 : vector<16x128xf32>
    %cst_28 = arith.constant dense<0.000000e+00> : vector<16x32xf32>
    %68 = tpu.matmul %67, %36, %cst_28 {dimension_numbers = #tpu.dot_dimension_numbers<[1], [0], [0], [1], [0, 0, 1, 1], [], []>} : vector<16x128xf32>, vector<128x32xf32>, vector<16x32xf32> -> vector<16x32xf32>
    %69 = vector.broadcast %31 : vector<1x32xf32> to vector<16x32xf32>
    %70 = arith.addf %68, %69 : vector<16x32xf32>
    %71 = arith.addf %70, %62 : vector<16x32xf32>
    %cst_29 = arith.constant dense<0.000000e+00> : vector<16xf32>
    %72 = vector.multi_reduction <add>, %71, %cst_29 [1] : vector<16x32xf32> to vector<16xf32>
    %73 = vector.shape_cast %72 : vector<16xf32> to vector<16x1xf32>
    %cst_30 = arith.constant 3.200000e+01 : f32
    %74 = vector.broadcast %cst_30 : f32 to vector<16x1xf32>
    %75 = arith.divf %73, %74 : vector<16x1xf32>
    %76 = vector.broadcast %75 : vector<16x1xf32> to vector<16x32xf32>
    %77 = arith.subf %71, %76 : vector<16x32xf32>
    %78 = arith.mulf %77, %77 : vector<16x32xf32>
    %cst_31 = arith.constant dense<0.000000e+00> : vector<16xf32>
    %79 = vector.multi_reduction <add>, %78, %cst_31 [1] : vector<16x32xf32> to vector<16xf32>
    %80 = vector.shape_cast %79 : vector<16xf32> to vector<16x1xf32>
    %cst_32 = arith.constant 3.200000e+01 : f32
    %81 = vector.broadcast %cst_32 : f32 to vector<16x1xf32>
    %82 = arith.divf %80, %81 : vector<16x1xf32>
    %83 = vector.broadcast %75 : vector<16x1xf32> to vector<16x32xf32>
    %84 = arith.subf %71, %83 : vector<16x32xf32>
    %cst_33 = arith.constant 9.99999974E-6 : f32
    %85 = vector.broadcast %cst_33 : f32 to vector<16x1xf32>
    %86 = arith.addf %82, %85 : vector<16x1xf32>
    %87 = math.rsqrt %86 : vector<16x1xf32>
    %88 = vector.broadcast %87 : vector<16x1xf32> to vector<16x32xf32>
    %89 = arith.mulf %84, %88 : vector<16x32xf32>
    %90 = vector.broadcast %32 : vector<1x32xf32> to vector<16x32xf32>
    %91 = arith.mulf %89, %90 : vector<16x32xf32>
    %92 = vector.broadcast %33 : vector<1x32xf32> to vector<16x32xf32>
    %93 = arith.addf %91, %92 : vector<16x32xf32>
    %c0_34 = arith.constant 0 : index
    %c0_35 = arith.constant 0 : index
    %94 = vector.load %arg6[%c0_34, %c0_35] : memref<16x32xf32, #tpu.memory_space<vmem>>, vector<16x32xf32>
    tpu.vector_store %arg6[%c0_34, %c0_35], %93 {strides = array<i32>} : memref<16x32xf32, #tpu.memory_space<vmem>>, vector<16x32xf32>,
    return
  }
}

</mosaic_0001>

<llo_original>
// kernel: tpu_custom_call.1
$region0: #{tpu_custom_call.1}
  #allocation0 [shape = 'u32[]', space=smem, size = 0x4, offset = 0x4, fixed_abs, tag = 'smem constant byte address 0x4 - core index']
  #allocation1 [shape = 'u32[144,128]{1,0:T(1,128)}', space=vmem, size = 0x12000, scoped, tag = 'internal scratch']
  %s0 = inlined_call_operand.hbm [shape: f32[16,128], index: 0, kind: input, shape index: {}]
  %s1 = inlined_call_operand.hbm [shape: f32[16,64], index: 1, kind: input, shape index: {}]
  %s2 = inlined_call_operand.hbm [shape: f32[128,128], index: 2, kind: input, shape index: {}]
  %s3 = inlined_call_operand.hbm [shape: f32[64,128], index: 3, kind: input, shape index: {}]
  %s4 = inlined_call_operand.hbm [shape: f32[64,128], index: 4, kind: input, shape index: {}]
  %s5 = inlined_call_operand.vmem [shape: f32[8,128], index: 5, kind: input, shape index: {}]
  %s6 = inlined_call_operand.hbm [shape: f32[16,32], index: 6, kind: output, shape index: {}]
  %s7 = sld [smem:[#allocation0]]
  $region54: #{tpu_custom_call.1} parent=0
    _
  %s9 = ssub.s32 1, %s7
  %s10 = scalar_select 0, %s9, %s7
  $region1: #{tpu_custom_call.1} parent=0
    #allocation2 [shape = 'u8[8192]{0}', space=vmem, size = 0x2000, scoped, tag = 'input window, operand 0, single buffered']
    #allocation3 [shape = 's32[1]{0}', space=sflag, size = 0x4, scoped, tag = 'scoped memory for tpu_custom_call.1']
    #allocation4 [shape = 's32[1]{0}', space=sflag, size = 0x4, scoped, tag = 'scoped memory for tpu_custom_call.1']
    #allocation5 [shape = 'u8[8192]{0}', space=vmem, size = 0x2000, scoped, tag = 'input window, operand 1, single buffered']
    #allocation6 [shape = 's32[1]{0}', space=sflag, size = 0x4, scoped, tag = 'scoped memory for tpu_custom_call.1']
    #allocation7 [shape = 'u8[65536]{0}', space=vmem, size = 0x10000, scoped, tag = 'input window, operand 2, single buffered']
    #allocation8 [shape = 'u8[32768]{0}', space=vmem, size = 0x8000, scoped, tag = 'input window, operand 3, single buffered']
    #allocation9 [shape = 's32[1]{0}', space=sflag, size = 0x4, scoped, tag = 'scoped memory for tpu_custom_call.1']
    #allocation10 [shape = 'u8[32768]{0}', space=vmem, size = 0x8000, scoped, tag = 'input window, operand 4, single buffered']
    #allocation11 [shape = 'u8[8192]{0}', space=vmem, size = 0x2000, scoped, tag = 'output window, operand 0, single buffered']
    %11 = vsyncpa [#allocation3], 0
    %12 = vsyncpa [#allocation6], 0
    %13 = vsyncpa [#allocation9], 0
    %14 = vsyncpa [#allocation4], 0
    // Predicated region
    $region2: #{tpu_custom_call.1} parent=1 // pred_check
      _
    $region3: #{tpu_custom_call.1} parent=1 // pred_check_branch
      %16 = sbr.rel (0) target = $region5
    $region4: #{tpu_custom_call.1} parent=1 // pred_region
      %s18 = ssub.s32 256, 256
      %19 = vsyncadd [#allocation3], %s18
      %s20 = sshll.u32 [#allocation2], 4
      %s21 = int_to_ptr.vmem [resolvable:$true] %s20
      %26 = dma.hbm_to_vmem [thread:$0]  %s0, 256, %s21, [#allocation3], 128, 128, 8
    $region5: #{tpu_custom_call.1} parent=1 // pred_fallthru
      _
    // Predicated region
    $region6: #{tpu_custom_call.1} parent=1 // pred_check
      _
    $region7: #{tpu_custom_call.1} parent=1 // pred_check_branch
      %28 = sbr.rel (0) target = $region9
    $region8: #{tpu_custom_call.1} parent=1 // pred_region
      %s30 = ssub.s32 256, 256
      %31 = vsyncadd [#allocation6], %s30
      %s32 = sshll.u32 [#allocation5], 4
      %s33 = int_to_ptr.vmem [resolvable:$true] %s32
      %38 = dma.hbm_to_vmem [thread:$0]  %s1, 256, %s33, [#allocation6], 128, 128, 8
    $region9: #{tpu_custom_call.1} parent=1 // pred_fallthru
      _
    // Predicated region
    $region10: #{tpu_custom_call.1} parent=1 // pred_check
      _
    $region11: #{tpu_custom_call.1} parent=1 // pred_check_branch
      %40 = sbr.rel (0) target = $region13
    $region12: #{tpu_custom_call.1} parent=1 // pred_region
      %s42 = ssub.s32 2048, 2048
      %43 = vsyncadd [#allocation6], %s42
      %s44 = sshll.u32 [#allocation7], 4
      %s45 = int_to_ptr.vmem [resolvable:$true] %s44
      %50 = dma.hbm_to_vmem [thread:$0]  %s2, 2048, %s45, [#allocation6], 128, 128, 8
    $region13: #{tpu_custom_call.1} parent=1 // pred_fallthru
      _
    // Predicated region
    $region14: #{tpu_custom_call.1} parent=1 // pred_check
      _
    $region15: #{tpu_custom_call.1} parent=1 // pred_check_branch
      %52 = sbr.rel (0) target = $region17
    $region16: #{tpu_custom_call.1} parent=1 // pred_region
      %s54 = ssub.s32 1024, 1024
      %55 = vsyncadd [#allocation9], %s54
      %s56 = sshll.u32 [#allocation8], 4
      %s57 = int_to_ptr.vmem [resolvable:$true] %s56
      %62 = dma.hbm_to_vmem [thread:$0]  %s3, 1024, %s57, [#allocation9], 128, 128, 8
    $region17: #{tpu_custom_call.1} parent=1 // pred_fallthru
      _
    // Predicated region
    $region18: #{tpu_custom_call.1} parent=1 // pred_check
      _
    $region19: #{tpu_custom_call.1} parent=1 // pred_check_branch
      %64 = sbr.rel (0) target = $region21
    $region20: #{tpu_custom_call.1} parent=1 // pred_region
      %s66 = ssub.s32 1024, 1024
      %67 = vsyncadd [#allocation9], %s66
      %s68 = sshll.u32 [#allocation10], 4
      %s69 = int_to_ptr.vmem [resolvable:$true] %s68
      %74 = dma.hbm_to_vmem [thread:$0]  %s4, 1024, %s69, [#allocation9], 128, 128, 8
    $region21: #{tpu_custom_call.1} parent=1 // pred_fallthru
      _
    // Predicated region
    $region22: #{tpu_custom_call.1} parent=1 // pred_check
      _
    $region23: #{tpu_custom_call.1} parent=1 // pred_check_branch
      %76 = sbr.rel (0) target = $region25
    $region24: #{tpu_custom_call.1} parent=1 // pred_region
      _
    $region25: #{tpu_custom_call.1} parent=1 // pred_fallthru
      _
    // Predicated region
    $region26: #{tpu_custom_call.1} parent=1 // pred_check
      _
    $region27: #{tpu_custom_call.1} parent=1 // pred_check_branch
      %78 = sbr.rel (0) target = $region29
    $region28: #{tpu_custom_call.1} parent=1 // pred_region
      %79 = dma.done [#allocation3], 256
    $region29: #{tpu_custom_call.1} parent=1 // pred_fallthru
      _
    // Predicated region
    $region30: #{tpu_custom_call.1} parent=1 // pred_check
      _
    $region31: #{tpu_custom_call.1} parent=1 // pred_check_branch
      %81 = sbr.rel (0) target = $region33
    $region32: #{tpu_custom_call.1} parent=1 // pred_region
      %82 = dma.done [#allocation6], 256
    $region33: #{tpu_custom_call.1} parent=1 // pred_fallthru
      _
    // Predicated region
    $region34: #{tpu_custom_call.1} parent=1 // pred_check
      _
    $region35: #{tpu_custom_call.1} parent=1 // pred_check_branch
      %84 = sbr.rel (0) target = $region37
    $region36: #{tpu_custom_call.1} parent=1 // pred_region
      %85 = dma.done [#allocation6], 2048
    $region37: #{tpu_custom_call.1} parent=1 // pred_fallthru
      _
    // Predicated region
    $region38: #{tpu_custom_call.1} parent=1 // pred_check
      _
    $region39: #{tpu_custom_call.1} parent=1 // pred_check_branch
      %87 = sbr.rel (0) target = $region41
    $region40: #{tpu_custom_call.1} parent=1 // pred_region
      %88 = dma.done [#allocation9], 1024
    $region41: #{tpu_custom_call.1} parent=1 // pred_fallthru
      _
    // Predicated region
    $region42: #{tpu_custom_call.1} parent=1 // pred_check
      _
    $region43: #{tpu_custom_call.1} parent=1 // pred_check_branch
      %90 = sbr.rel (0) target = $region45
    $region44: #{tpu_custom_call.1} parent=1 // pred_region
      %91 = dma.done [#allocation9], 1024
    $region45: #{tpu_custom_call.1} parent=1 // pred_fallthru
      _
    %v92 = vld [vmem:[#allocation2] sm:$0xff]
    %v93 = vld [vmem:[#allocation2 + $0x8] sm:$0xff]
    %v94 = vld [vmem:[#allocation7] sm:$0xff]
    %v95 = vld [vmem:[#allocation7 + $0x8] sm:$0xff]
    %v96 = vld [vmem:[#allocation7 + $0x10] sm:$0xff]
    %v97 = vld [vmem:[#allocation7 + $0x18] sm:$0xff]
    %v98 = vld [vmem:[#allocation7 + $0x20] sm:$0xff]
    %v99 = vld [vmem:[#allocation7 + $0x28] sm:$0xff]
    %v100 = vld [vmem:[#allocation7 + $0x30] sm:$0xff]
    %v101 = vld [vmem:[#allocation7 + $0x38] sm:$0xff]
    %v102 = vld [vmem:[#allocation7 + $0x40] sm:$0xff]
    %v103 = vld [vmem:[#allocation7 + $0x48] sm:$0xff]
    %v104 = vld [vmem:[#allocation7 + $0x50] sm:$0xff]
    %v105 = vld [vmem:[#allocation7 + $0x58] sm:$0xff]
    %v106 = vld [vmem:[#allocation7 + $0x60] sm:$0xff]
    %v107 = vld [vmem:[#allocation7 + $0x68] sm:$0xff]
    %v108 = vld [vmem:[#allocation7 + $0x70] sm:$0xff]
    %v109 = vld [vmem:[#allocation7 + $0x78] sm:$0xff]
    %110 = vmatprep.subr.mxu0 0.0
    %111 = vmatpush1.msra.mxu0 %v94
    %112 = vmatprep.subr.mxu0 0.0
    %113 = vmatpush1.msra.mxu0 %v95
    %114 = vmatprep.subr.mxu0 0.0
    %115 = vmatpush1.msra.mxu0 %v96
    %116 = vmatprep.subr.mxu0 0.0
    %117 = vmatpush1.msra.mxu0 %v97
    %118 = vmatprep.subr.mxu0 0.0
    %119 = vmatpush1.msra.mxu0 %v98
    %120 = vmatprep.subr.mxu0 0.0
    %121 = vmatpush1.msra.mxu0 %v99
    %122 = vmatprep.subr.mxu0 0.0
    %123 = vmatpush1.msra.mxu0 %v100
    %124 = vmatprep.subr.mxu0 0.0
    %125 = vmatpush1.msra.mxu0 %v101
    %126 = vmatprep.subr.mxu0 0.0
    %127 = vmatpush1.msra.mxu0 %v102
    %128 = vmatprep.subr.mxu0 0.0
    %129 = vmatpush1.msra.mxu0 %v103
    %130 = vmatprep.subr.mxu0 0.0
    %131 = vmatpush1.msra.mxu0 %v104
    %132 = vmatprep.subr.mxu0 0.0
    %133 = vmatpush1.msra.mxu0 %v105
    %134 = vmatprep.subr.mxu0 0.0
    %135 = vmatpush1.msra.mxu0 %v106
    %136 = vmatprep.subr.mxu0 0.0
    %137 = vmatpush1.msra.mxu0 %v107
    %138 = vmatprep.subr.mxu0 0.0
    %139 = vmatpush1.msra.mxu0 %v108
    %140 = vmatprep.subr.mxu0 0.0
    %141 = vmatpush1.msra.mxu0 %v109
    %142 = vmatprep.subr.mxu0 0.0
    %143 = vmatpush1.msra.mxu0 0.0
    %144 = vmatprep.subr.mxu0 0.0
    %145 = vmatpush1.msra.mxu0 0.0
    %146 = vmatprep.subr.mxu0 0.0
    %147 = vmatpush1.msra.mxu0 0.0
    %148 = vmatprep.subr.mxu0 0.0
    %149 = vmatpush1.msra.mxu0 0.0
    %150 = vmatprep.subr.mxu0 0.0
    %151 = vmatpush1.msra.mxu0 0.0
    %152 = vmatprep.subr.mxu0 0.0
    %153 = vmatpush1.msra.mxu0 0.0
    %154 = vmatprep.subr.mxu0 0.0
    %155 = vmatpush1.msra.mxu0 0.0
    %156 = vmatprep.subr.mxu0 0.0
    %157 = vmatpush1.msra.mxu0 0.0
    %158 = vmatprep.subr.mxu0 0.0
    %159 = vmatpush1.msra.mxu0 0.0
    %160 = vmatprep.subr.mxu0 0.0
    %161 = vmatpush1.msra.mxu0 0.0
    %162 = vmatprep.subr.mxu0 0.0
    %163 = vmatpush1.msra.mxu0 0.0
    %164 = vmatprep.subr.mxu0 0.0
    %165 = vmatpush1.msra.mxu0 0.0
    %166 = vmatprep.subr.mxu0 0.0
    %167 = vmatpush1.msra.mxu0 0.0
    %168 = vmatprep.subr.mxu0 0.0
    %169 = vmatpush1.msra.mxu0 0.0
    %170 = vmatprep.subr.mxu0 0.0
    %171 = vmatpush1.msra.mxu0 0.0
    %172 = vmatprep.subr.mxu0 0.0
    %173 = vmatpush1.msra.mxu0 0.0
    %174 = vmatprep.mubr.f32.mxu0 0.0
    %175 = vmatmul.mubr.f32.gmra.mrb[0].mxu0 %v92
    %v176 = vpop.f32.mrb[0].mxu0
    %v177 = vadd.f32 0.0, %v176
    %v178 = vpop.f32.mrb[0].mxu0
    %179 = vmatprep.mubr.f32.mxu0 0.0
    %180 = vmatmul.mubr.f32.gmra.mrb[0].mxu0 %v93
    %v181 = vpop.f32.mrb[0].mxu0
    %v182 = vadd.f32 0.0, %v181
    %v183 = vpop.f32.mrb[0].mxu0
    %184 = vdwg.mxu0
    %v185 = vld [vmem:[#allocation10] sm:$0xff]
    %v186 = vld [vmem:[#allocation10 + $0x8] sm:$0xff]
    %v187 = vld [vmem:[#allocation10 + $0x10] sm:$0xff]
    %v188 = vld [vmem:[#allocation10 + $0x18] sm:$0xff]
    %v189 = vld [vmem:[#allocation10 + $0x20] sm:$0xff]
    %v190 = vld [vmem:[#allocation10 + $0x28] sm:$0xff]
    %v191 = vld [vmem:[#allocation10 + $0x30] sm:$0xff]
    %v192 = vld [vmem:[#allocation10 + $0x38] sm:$0xff]
    %201 = vrot.lane.b32.xlu0 %v185, 32
    %v202 = vpop.permute.xlu0 %201
    %203 = vrot.lane.b32.xlu0 %v186, 32
    %v204 = vpop.permute.xlu0 %203
    %205 = vrot.lane.b32.xlu0 %v187, 32
    %v206 = vpop.permute.xlu0 %205
    %207 = vrot.lane.b32.xlu0 %v188, 32
    %v208 = vpop.permute.xlu0 %207
    %209 = vrot.lane.b32.xlu0 %v189, 32
    %v210 = vpop.permute.xlu0 %209
    %211 = vrot.lane.b32.xlu0 %v190, 32
    %v212 = vpop.permute.xlu0 %211
    %213 = vrot.lane.b32.xlu0 %v191, 32
    %v214 = vpop.permute.xlu0 %213
    %215 = vrot.lane.b32.xlu0 %v192, 32
    %v216 = vpop.permute.xlu0 %215
    %v225 = vmul.f32 %v177, %v202
    %v226 = vmul.f32 %v182, %v204
    %v227 = vmul.f32 %v177, %v206
    %v228 = vmul.f32 %v182, %v208
    %v229 = vmul.f32 %v177, %v210
    %v230 = vmul.f32 %v182, %v212
    %v231 = vmul.f32 %v177, %v214
    %v232 = vmul.f32 %v182, %v216
    %v233 = vmul.f32 %v177, %v185
    %v234 = vmul.f32 %v182, %v186
    %v235 = vmul.f32 %v177, %v187
    %v236 = vmul.f32 %v182, %v188
    %v237 = vmul.f32 %v177, %v189
    %v238 = vmul.f32 %v182, %v190
    %v239 = vmul.f32 %v177, %v191
    %v240 = vmul.f32 %v182, %v192
    %v241 = vld [vmem:[#allocation5] sm:$0xff]
    %v242 = vld [vmem:[#allocation5 + $0x8] sm:$0xff]
    %245 = vrot.lane.b32.xlu0 %v177, 64
    %v246 = vpop.permute.xlu0 %245
    %247 = vrot.lane.b32.xlu0 %v182, 64
    %v248 = vpop.permute.xlu0 %247
    %257 = vrot.lane.b32.xlu0 %v225, 96
    %v258 = vpop.permute.xlu0 %257
    %259 = vrot.lane.b32.xlu0 %v226, 96
    %v260 = vpop.permute.xlu0 %259
    %261 = vrot.lane.b32.xlu0 %v227, 96
    %v262 = vpop.permute.xlu0 %261
    %263 = vrot.lane.b32.xlu0 %v228, 96
    %v264 = vpop.permute.xlu0 %263
    %265 = vrot.lane.b32.xlu0 %v229, 96
    %v266 = vpop.permute.xlu0 %265
    %267 = vrot.lane.b32.xlu0 %v230, 96
    %v268 = vpop.permute.xlu0 %267
    %269 = vrot.lane.b32.xlu0 %v231, 96
    %v270 = vpop.permute.xlu0 %269
    %271 = vrot.lane.b32.xlu0 %v232, 96
    %v272 = vpop.permute.xlu0 %271
    %vm273 = vcmask 261120
    %v274 = vsel %vm273, %v246, 0
    %v276 = vsel %vm273, %v248, 0
    %v278 = vsel %vm273, %v258, 0
    %v280 = vsel %vm273, %v260, 0
    %v282 = vsel %vm273, %v262, 0
    %v284 = vsel %vm273, %v264, 0
    %v286 = vsel %vm273, %v266, 0
    %v288 = vsel %vm273, %v268, 0
    %v290 = vsel %vm273, %v270, 0
    %v292 = vsel %vm273, %v272, 0
    %294 = vmatprep.subr.mxu0 0.0
    %295 = vmatpush1.xpose.msra.mxu0 %v278
    %296 = vmatprep.subr.mxu0 0.0
    %297 = vmatpush1.xpose.msra.mxu0 %v280
    %298 = vmatprep.subr.mxu0 0.0
    %299 = vmatpush1.xpose.msra.mxu0 %v282
    %300 = vmatprep.subr.mxu0 0.0
    %301 = vmatpush1.xpose.msra.mxu0 %v284
    %302 = vmatprep.subr.mxu0 0.0
    %303 = vmatpush1.xpose.msra.mxu0 %v286
    %304 = vmatprep.subr.mxu0 0.0
    %305 = vmatpush1.xpose.msra.mxu0 %v288
    %306 = vmatprep.subr.mxu0 0.0
    %307 = vmatpush1.xpose.msra.mxu0 %v290
    %308 = vmatprep.subr.mxu0 0.0
    %309 = vmatpush1.xpose.msra.mxu0 %v292
    %310 = vmatprep.subr.mxu0 0.0
    %311 = vmatpush1.xpose.msra.mxu0 0.0
    %312 = vmatprep.subr.mxu0 0.0
    %313 = vmatpush1.xpose.msra.mxu0 0.0
    %314 = vmatprep.subr.mxu0 0.0
    %315 = vmatpush1.xpose.msra.mxu0 0.0
    %316 = vmatprep.subr.mxu0 0.0
    %317 = vmatpush1.xpose.msra.mxu0 0.0
    %318 = vmatprep.subr.mxu0 0.0
    %319 = vmatpush1.xpose.msra.mxu0 0.0
    %320 = vmatprep.subr.mxu0 0.0
    %321 = vmatpush1.xpose.msra.mxu0 0.0
    %322 = vmatprep.subr.mxu0 0.0
    %323 = vmatpush1.xpose.msra.mxu0 0.0
    %324 = vmatprep.subr.mxu0 0.0
    %325 = vmatpush1.xpose.msra.mxu0 0.0
    %326 = vmatprep.subr.mxu0 0.0
    %327 = vmatpush1.xpose.msra.mxu0 0.0
    %328 = vmatprep.subr.mxu0 0.0
    %329 = vmatpush1.xpose.msra.mxu0 0.0
    %330 = vmatprep.subr.mxu0 0.0
    %331 = vmatpush1.xpose.msra.mxu0 0.0
    %332 = vmatprep.subr.mxu0 0.0
    %333 = vmatpush1.xpose.msra.mxu0 0.0
    %334 = vmatprep.subr.mxu0 0.0
    %335 = vmatpush1.xpose.msra.mxu0 0.0
    %336 = vmatprep.subr.mxu0 0.0
    %337 = vmatpush1.xpose.msra.mxu0 0.0
    %338 = vmatprep.subr.mxu0 0.0
    %339 = vmatpush1.xpose.msra.mxu0 0.0
    %340 = vmatprep.subr.mxu0 0.0
    %341 = vmatpush1.xpose.msra.mxu0 0.0
    %342 = vmatprep.subr.mxu0 0.0
    %343 = vmatpush1.xpose.msra.mxu0 0.0
    %344 = vmatprep.subr.mxu0 0.0
    %345 = vmatpush1.xpose.msra.mxu0 0.0
    %346 = vmatprep.subr.mxu0 0.0
    %347 = vmatpush1.xpose.msra.mxu0 0.0
    %348 = vmatprep.subr.mxu0 0.0
    %349 = vmatpush1.xpose.msra.mxu0 0.0
    %350 = vmatprep.subr.mxu0 0.0
    %351 = vmatpush1.xpose.msra.mxu0 0.0
    %352 = vmatprep.subr.mxu0 0.0
    %353 = vmatpush1.xpose.msra.mxu0 0.0
    %354 = vmatprep.subr.mxu0 0.0
    %355 = vmatpush1.xpose.msra.mxu0 0.0
    %356 = vmatprep.subr.mxu0 0.0
    %357 = vmatpush1.xpose.msra.mxu0 0.0
    %358 = vmatprep.mubr.f32.mxu0 0.0
    %359 = vmatmul.mubr.f32.gmra.mrb[0].mxu0 %v274
    %v360 = vpop.f32.mrb[0].mxu0
    %v361 = vadd.f32 %v241, %v360
    %v362 = vpop.f32.mrb[0].mxu0
    %363 = vmatprep.mubr.f32.mxu0 0.0
    %364 = vmatmul.mubr.f32.gmra.mrb[0].mxu0 %v276
    %v365 = vpop.f32.mrb[0].mxu0
    %v366 = vadd.f32 %v242, %v365
    %v367 = vpop.f32.mrb[0].mxu0
    %368 = vdwg.mxu0
    %vm369 = vcmask 523264
    %v370 = vsel %vm369, %v361, -inf
    %371 = vmax.xlane.f32.xlu0 %v370
    %v372 = vpop.xlane.xlu0 %371
    %v373 = vsel %vm369, %v366, -inf
    %374 = vmax.xlane.f32.xlu0 %v373
    %v375 = vpop.xlane.xlu0 %374
    %v376 = vsub.f32 %v361, %v372
    %v377 = vsub.f32 %v366, %v375
    %v378 = vmul.f32 %v376, 1.442695
    %v379 = vpow.pop %v378
    %v380 = vmul.f32 %v377, 1.442695
    %v381 = vpow.pop %v380
    %382 = vrot.lane.b32.xlu0 %v185, 96
    %v383 = vpop.permute.xlu0 %382
    %384 = vrot.lane.b32.xlu0 %v186, 96
    %v385 = vpop.permute.xlu0 %384
    %386 = vrot.lane.b32.xlu0 %v187, 96
    %v387 = vpop.permute.xlu0 %386
    %388 = vrot.lane.b32.xlu0 %v188, 96
    %v389 = vpop.permute.xlu0 %388
    %390 = vrot.lane.b32.xlu0 %v189, 96
    %v391 = vpop.permute.xlu0 %390
    %392 = vrot.lane.b32.xlu0 %v190, 96
    %v393 = vpop.permute.xlu0 %392
    %394 = vrot.lane.b32.xlu0 %v191, 96
    %v395 = vpop.permute.xlu0 %394
    %396 = vrot.lane.b32.xlu0 %v192, 96
    %v397 = vpop.permute.xlu0 %396
    %v407 = vsel %vm369, %v379, 0
    %v410 = vsel %vm369, %v381, 0
    %412 = vmatprep.subr.mxu0 0.0
    %413 = vmatpush1.msra.mxu0 %v383
    %414 = vmatprep.subr.mxu0 0.0
    %415 = vmatpush1.msra.mxu0 %v385
    %416 = vmatprep.subr.mxu0 0.0
    %417 = vmatpush1.msra.mxu0 %v387
    %418 = vmatprep.subr.mxu0 0.0
    %419 = vmatpush1.msra.mxu0 %v389
    %420 = vmatprep.subr.mxu0 0.0
    %421 = vmatpush1.msra.mxu0 %v391
    %422 = vmatprep.subr.mxu0 0.0
    %423 = vmatpush1.msra.mxu0 %v393
    %424 = vmatprep.subr.mxu0 0.0
    %425 = vmatpush1.msra.mxu0 %v395
    %426 = vmatprep.subr.mxu0 0.0
    %427 = vmatpush1.msra.mxu0 %v397
    %428 = vmatprep.subr.mxu0 0.0
    %429 = vmatpush1.msra.mxu0 0.0
    %430 = vmatprep.subr.mxu0 0.0
    %431 = vmatpush1.msra.mxu0 0.0
    %432 = vmatprep.subr.mxu0 0.0
    %433 = vmatpush1.msra.mxu0 0.0
    %434 = vmatprep.subr.mxu0 0.0
    %435 = vmatpush1.msra.mxu0 0.0
    %436 = vmatprep.subr.mxu0 0.0
    %437 = vmatpush1.msra.mxu0 0.0
    %438 = vmatprep.subr.mxu0 0.0
    %439 = vmatpush1.msra.mxu0 0.0
    %440 = vmatprep.subr.mxu0 0.0
    %441 = vmatpush1.msra.mxu0 0.0
    %442 = vmatprep.subr.mxu0 0.0
    %443 = vmatpush1.msra.mxu0 0.0
    %444 = vmatprep.subr.mxu0 0.0
    %445 = vmatpush1.msra.mxu0 0.0
    %446 = vmatprep.subr.mxu0 0.0
    %447 = vmatpush1.msra.mxu0 0.0
    %448 = vmatprep.subr.mxu0 0.0
    %449 = vmatpush1.msra.mxu0 0.0
    %450 = vmatprep.subr.mxu0 0.0
    %451 = vmatpush1.msra.mxu0 0.0
    %452 = vmatprep.subr.mxu0 0.0
    %453 = vmatpush1.msra.mxu0 0.0
    %454 = vmatprep.subr.mxu0 0.0
    %455 = vmatpush1.msra.mxu0 0.0
    %456 = vmatprep.subr.mxu0 0.0
    %457 = vmatpush1.msra.mxu0 0.0
    %458 = vmatprep.subr.mxu0 0.0
    %459 = vmatpush1.msra.mxu0 0.0
    %460 = vmatprep.subr.mxu0 0.0
    %461 = vmatpush1.msra.mxu0 0.0
    %462 = vmatprep.subr.mxu0 0.0
    %463 = vmatpush1.msra.mxu0 0.0
    %464 = vmatprep.subr.mxu0 0.0
    %465 = vmatpush1.msra.mxu0 0.0
    %466 = vmatprep.subr.mxu0 0.0
    %467 = vmatpush1.msra.mxu0 0.0
    %468 = vmatprep.subr.mxu0 0.0
    %469 = vmatpush1.msra.mxu0 0.0
    %470 = vmatprep.subr.mxu0 0.0
    %471 = vmatpush1.msra.mxu0 0.0
    %472 = vmatprep.subr.mxu0 0.0
    %473 = vmatpush1.msra.mxu0 0.0
    %474 = vmatprep.subr.mxu0 0.0
    %475 = vmatpush1.msra.mxu0 0.0
    %476 = vmatprep.mubr.f32.mxu0 0.0
    %477 = vmatmul.mubr.f32.gmra.mrb[0].mxu0 %v407
    %v478 = vpop.f32.mrb[0].mxu0
    %v479 = vadd.f32 1e-30, %v478
    %v480 = vpop.f32.mrb[0].mxu0
    %481 = vmatprep.mubr.f32.mxu0 0.0
    %482 = vmatmul.mubr.f32.gmra.mrb[0].mxu0 %v410
    %v483 = vpop.f32.mrb[0].mxu0
    %v484 = vadd.f32 1e-30, %v483
    %v485 = vpop.f32.mrb[0].mxu0
    %486 = vdwg.mxu0
    %v487 = vrcp.pop %v479
    %v488 = vmul.f32 %v379, %v487
    %v489 = vrcp.pop %v484
    %v490 = vmul.f32 %v381, %v489
    %v492 = vsel %vm369, %v488, 0
    %v495 = vsel %vm369, %v490, 0
    %497 = vmatprep.subr.mxu0 0.0
    %498 = vmatpush1.msra.mxu0 %v233
    %499 = vmatprep.subr.mxu0 0.0
    %500 = vmatpush1.msra.mxu0 %v234
    %501 = vmatprep.subr.mxu0 0.0
    %502 = vmatpush1.msra.mxu0 %v235
    %503 = vmatprep.subr.mxu0 0.0
    %504 = vmatpush1.msra.mxu0 %v236
    %505 = vmatprep.subr.mxu0 0.0
    %506 = vmatpush1.msra.mxu0 %v237
    %507 = vmatprep.subr.mxu0 0.0
    %508 = vmatpush1.msra.mxu0 %v238
    %509 = vmatprep.subr.mxu0 0.0
    %510 = vmatpush1.msra.mxu0 %v239
    %511 = vmatprep.subr.mxu0 0.0
    %512 = vmatpush1.msra.mxu0 %v240
    %513 = vmatprep.subr.mxu0 0.0
    %514 = vmatpush1.msra.mxu0 0.0
    %515 = vmatprep.subr.mxu0 0.0
    %516 = vmatpush1.msra.mxu0 0.0
    %517 = vmatprep.subr.mxu0 0.0
    %518 = vmatpush1.msra.mxu0 0.0
    %519 = vmatprep.subr.mxu0 0.0
    %520 = vmatpush1.msra.mxu0 0.0
    %521 = vmatprep.subr.mxu0 0.0
    %522 = vmatpush1.msra.mxu0 0.0
    %523 = vmatprep.subr.mxu0 0.0
    %524 = vmatpush1.msra.mxu0 0.0
    %525 = vmatprep.subr.mxu0 0.0
    %526 = vmatpush1.msra.mxu0 0.0
    %527 = vmatprep.subr.mxu0 0.0
    %528 = vmatpush1.msra.mxu0 0.0
    %529 = vmatprep.subr.mxu0 0.0
    %530 = vmatpush1.msra.mxu0 0.0
    %531 = vmatprep.subr.mxu0 0.0
    %532 = vmatpush1.msra.mxu0 0.0
    %533 = vmatprep.subr.mxu0 0.0
    %534 = vmatpush1.msra.mxu0 0.0
    %535 = vmatprep.subr.mxu0 0.0
    %536 = vmatpush1.msra.mxu0 0.0
    %537 = vmatprep.subr.mxu0 0.0
    %538 = vmatpush1.msra.mxu0 0.0
    %539 = vmatprep.subr.mxu0 0.0
    %540 = vmatpush1.msra.mxu0 0.0
    %541 = vmatprep.subr.mxu0 0.0
    %542 = vmatpush1.msra.mxu0 0.0
    %543 = vmatprep.subr.mxu0 0.0
    %544 = vmatpush1.msra.mxu0 0.0
    %545 = vmatprep.subr.mxu0 0.0
    %546 = vmatpush1.msra.mxu0 0.0
    %547 = vmatprep.subr.mxu0 0.0
    %548 = vmatpush1.msra.mxu0 0.0
    %549 = vmatprep.subr.mxu0 0.0
    %550 = vmatpush1.msra.mxu0 0.0
    %551 = vmatprep.subr.mxu0 0.0
    %552 = vmatpush1.msra.mxu0 0.0
    %553 = vmatprep.subr.mxu0 0.0
    %554 = vmatpush1.msra.mxu0 0.0
    %555 = vmatprep.subr.mxu0 0.0
    %556 = vmatpush1.msra.mxu0 0.0
    %557 = vmatprep.subr.mxu0 0.0
    %558 = vmatpush1.msra.mxu0 0.0
    %559 = vmatprep.subr.mxu0 0.0
    %560 = vmatpush1.msra.mxu0 0.0
    %561 = vmatprep.mubr.f32.mxu0 0.0
    %562 = vmatmul.mubr.f32.gmra.mrb[0].mxu0 %v492
    %v563 = vpop.f32.mrb[0].mxu0
    %v564 = vadd.f32 0.0, %v563
    %v565 = vpop.f32.mrb[0].mxu0
    %566 = vmatprep.mubr.f32.mxu0 0.0
    %567 = vmatmul.mubr.f32.gmra.mrb[0].mxu0 %v495
    %v568 = vpop.f32.mrb[0].mxu0
    %v569 = vadd.f32 0.0, %v568
    %v570 = vpop.f32.mrb[0].mxu0
    %571 = vdwg.mxu0
    %v572 = vld [vmem:[%s5] sm:$0xff]
    %v573 = vld [vmem:[#allocation8] sm:$0xff]
    %v574 = vld [vmem:[#allocation8 + $0x8] sm:$0xff]
    %v575 = vld [vmem:[#allocation8 + $0x10] sm:$0xff]
    %v576 = vld [vmem:[#allocation8 + $0x18] sm:$0xff]
    %v577 = vld [vmem:[#allocation8 + $0x20] sm:$0xff]
    %v578 = vld [vmem:[#allocation8 + $0x28] sm:$0xff]
    %v579 = vld [vmem:[#allocation8 + $0x30] sm:$0xff]
    %v580 = vld [vmem:[#allocation8 + $0x38] sm:$0xff]
    %v581 = vld [vmem:[#allocation7] sm:$0xff]
    %v582 = vld [vmem:[#allocation7 + $0x8] sm:$0xff]
    %v583 = vld [vmem:[#allocation7 + $0x10] sm:$0xff]
    %v584 = vld [vmem:[#allocation7 + $0x18] sm:$0xff]
    %v585 = vld [vmem:[#allocation7 + $0x20] sm:$0xff]
    %v586 = vld [vmem:[#allocation7 + $0x28] sm:$0xff]
    %v587 = vld [vmem:[#allocation7 + $0x30] sm:$0xff]
    %v588 = vld [vmem:[#allocation7 + $0x38] sm:$0xff]
    %v589 = vld [vmem:[#allocation7 + $0x40] sm:$0xff]
    %v590 = vld [vmem:[#allocation7 + $0x48] sm:$0xff]
    %v591 = vld [vmem:[#allocation7 + $0x50] sm:$0xff]
    %v592 = vld [vmem:[#allocation7 + $0x58] sm:$0xff]
    %v593 = vld [vmem:[#allocation7 + $0x60] sm:$0xff]
    %v594 = vld [vmem:[#allocation7 + $0x68] sm:$0xff]
    %v595 = vld [vmem:[#allocation7 + $0x70] sm:$0xff]
    %v596 = vld [vmem:[#allocation7 + $0x78] sm:$0xff]
    %v597 = vlaneseq
    %v598 = vshrl.u32 %v597, 7
    %v599 = vsub.s32 1, %v598
    %v600 = vrot.slane %v572, %v599
    %v602 = vsel %vm273, %v564, 0
    %v605 = vsel %vm273, %v569, 0
    %607 = vmatprep.subr.mxu0 0.0
    %608 = vmatpush1.msra.mxu0 %v577
    %609 = vmatprep.subr.mxu0 0.0
    %610 = vmatpush1.msra.mxu0 %v578
    %611 = vmatprep.subr.mxu0 0.0
    %612 = vmatpush1.msra.mxu0 %v579
    %613 = vmatprep.subr.mxu0 0.0
    %614 = vmatpush1.msra.mxu0 %v580
    %615 = vmatprep.subr.mxu0 0.0
    %616 = vmatpush1.msra.mxu0 0.0
    %617 = vmatprep.subr.mxu0 0.0
    %618 = vmatpush1.msra.mxu0 0.0
    %619 = vmatprep.subr.mxu0 0.0
    %620 = vmatpush1.msra.mxu0 0.0
    %621 = vmatprep.subr.mxu0 0.0
    %622 = vmatpush1.msra.mxu0 0.0
    %623 = vmatprep.subr.mxu0 0.0
    %624 = vmatpush1.msra.mxu0 0.0
    %625 = vmatprep.subr.mxu0 0.0
    %626 = vmatpush1.msra.mxu0 0.0
    %627 = vmatprep.subr.mxu0 0.0
    %628 = vmatpush1.msra.mxu0 0.0
    %629 = vmatprep.subr.mxu0 0.0
    %630 = vmatpush1.msra.mxu0 0.0
    %631 = vmatprep.subr.mxu0 0.0
    %632 = vmatpush1.msra.mxu0 0.0
    %633 = vmatprep.subr.mxu0 0.0
    %634 = vmatpush1.msra.mxu0 0.0
    %635 = vmatprep.subr.mxu0 0.0
    %636 = vmatpush1.msra.mxu0 0.0
    %637 = vmatprep.subr.mxu0 0.0
    %638 = vmatpush1.msra.mxu0 0.0
    %639 = vmatprep.subr.mxu0 0.0
    %640 = vmatpush1.msra.mxu0 0.0
    %641 = vmatprep.subr.mxu0 0.0
    %642 = vmatpush1.msra.mxu0 0.0
    %643 = vmatprep.subr.mxu0 0.0
    %644 = vmatpush1.msra.mxu0 0.0
    %645 = vmatprep.subr.mxu0 0.0
    %646 = vmatpush1.msra.mxu0 0.0
    %647 = vmatprep.subr.mxu0 0.0
    %648 = vmatpush1.msra.mxu0 0.0
    %649 = vmatprep.subr.mxu0 0.0
    %650 = vmatpush1.msra.mxu0 0.0
    %651 = vmatprep.subr.mxu0 0.0
    %652 = vmatpush1.msra.mxu0 0.0
    %653 = vmatprep.subr.mxu0 0.0
    %654 = vmatpush1.msra.mxu0 0.0
    %655 = vmatprep.subr.mxu0 0.0
    %656 = vmatpush1.msra.mxu0 0.0
    %657 = vmatprep.subr.mxu0 0.0
    %658 = vmatpush1.msra.mxu0 0.0
    %659 = vmatprep.subr.mxu0 0.0
    %660 = vmatpush1.msra.mxu0 0.0
    %661 = vmatprep.subr.mxu0 0.0
    %662 = vmatpush1.msra.mxu0 0.0
    %663 = vmatprep.subr.mxu0 0.0
    %664 = vmatpush1.msra.mxu0 0.0
    %665 = vmatprep.subr.mxu0 0.0
    %666 = vmatpush1.msra.mxu0 0.0
    %667 = vmatprep.subr.mxu0 0.0
    %668 = vmatpush1.msra.mxu0 0.0
    %669 = vmatprep.subr.mxu0 0.0
    %670 = vmatpush1.msra.mxu0 0.0
    %671 = vmatprep.mubr.f32.mxu0 0.0
    %672 = vmatmul.mubr.f32.gmra.mrb[0].mxu0 %v602
    %v673 = vpop.f32.mrb[0].mxu0
    %v674 = vadd.f32 %v600, %v673
    %v675 = vpop.f32.mrb[0].mxu0
    %676 = vmatprep.mubr.f32.mxu0 0.0
    %677 = vmatmul.mubr.f32.gmra.mrb[0].mxu0 %v605
    %v678 = vpop.f32.mrb[0].mxu0
    %v679 = vadd.f32 %v600, %v678
    %v680 = vpop.f32.mrb[0].mxu0
    %681 = vdwg.mxu0
    %684 = vrot.lane.b32.xlu0 %v92, 64
    %v685 = vpop.permute.xlu0 %684
    %686 = vrot.lane.b32.xlu0 %v93, 64
    %v687 = vpop.permute.xlu0 %686
    %v690 = vadd.f32 %v674, %v685
    %v691 = vadd.f32 %v679, %v687
    %v692 = vsel %vm273, %v690, 0.0
    %693 = vadd.xlane.f32.xlu0 %v692
    %v694 = vpop.xlane.xlu0 %693
    %v695 = vsel %vm273, %v691, 0.0
    %696 = vadd.xlane.f32.xlu0 %v695
    %v697 = vpop.xlane.xlu0 %696
    %v698 = vrcp.pop 32.0
    %v699 = vmul.f32 %v694, %v698
    %v700 = vmul.f32 %v697, %v698
    %v701 = vsub.f32 %v690, %v699
    %v702 = vsub.f32 %v691, %v700
    %v703 = vmul.f32 %v701, %v701
    %v704 = vmul.f32 %v702, %v702
    %v705 = vsel %vm273, %v703, 0.0
    %706 = vadd.xlane.f32.xlu0 %v705
    %v707 = vpop.xlane.xlu0 %706
    %v708 = vsel %vm273, %v704, 0.0
    %709 = vadd.xlane.f32.xlu0 %v708
    %v710 = vpop.xlane.xlu0 %709
    %v711 = vmul.f32 %v707, %v698
    %v712 = vmul.f32 %v710, %v698
    %v713 = vadd.f32 %v711, 1e-05
    %v714 = vadd.f32 %v712, 1e-05
    %v715 = vrsqrt.pop %v713
    %v716 = vrsqrt.pop %v714
    %v717 = vmul.f32 %v701, %v715
    %v718 = vmul.f32 %v702, %v716
    %v719 = vlaneseq
    %v720 = vshrl.u32 %v719, 7
    %v721 = vsub.s32 2, %v720
    %v722 = vrot.slane %v572, %v721
    %v723 = vmul.f32 %v717, %v722
    %v724 = vmul.f32 %v718, %v722
    %v725 = vlaneseq
    %v726 = vshrl.u32 %v725, 7
    %v727 = vsub.s32 3, %v726
    %v728 = vrot.slane %v572, %v727
    %v729 = vadd.f32 %v723, %v728
    %v730 = vadd.f32 %v724, %v728
    %v731 = vlaneseq
    %v732 = vshrl.u32 %v731, 7
    %v733 = vsub.s32 0, %v732
    %v734 = vrot.slane %v572, %v733
    %v736 = vsel %vm273, %v729, 0
    %v739 = vsel %vm273, %v730, 0
    %741 = vmatprep.subr.mxu0 0.0
    %742 = vmatpush1.msra.mxu0 %v573
    %743 = vmatprep.subr.mxu0 0.0
    %744 = vmatpush1.msra.mxu0 %v574
    %745 = vmatprep.subr.mxu0 0.0
    %746 = vmatpush1.msra.mxu0 %v575
    %747 = vmatprep.subr.mxu0 0.0
    %748 = vmatpush1.msra.mxu0 %v576
    %749 = vmatprep.subr.mxu0 0.0
    %750 = vmatpush1.msra.mxu0 0.0
    %751 = vmatprep.subr.mxu0 0.0
    %752 = vmatpush1.msra.mxu0 0.0
    %753 = vmatprep.subr.mxu0 0.0
    %754 = vmatpush1.msra.mxu0 0.0
    %755 = vmatprep.subr.mxu0 0.0
    %756 = vmatpush1.msra.mxu0 0.0
    %757 = vmatprep.subr.mxu0 0.0
    %758 = vmatpush1.msra.mxu0 0.0
    %759 = vmatprep.subr.mxu0 0.0
    %760 = vmatpush1.msra.mxu0 0.0
    %761 = vmatprep.subr.mxu0 0.0
    %762 = vmatpush1.msra.mxu0 0.0
    %763 = vmatprep.subr.mxu0 0.0
    %764 = vmatpush1.msra.mxu0 0.0
    %765 = vmatprep.subr.mxu0 0.0
    %766 = vmatpush1.msra.mxu0 0.0
    %767 = vmatprep.subr.mxu0 0.0
    %768 = vmatpush1.msra.mxu0 0.0
    %769 = vmatprep.subr.mxu0 0.0
    %770 = vmatpush1.msra.mxu0 0.0
    %771 = vmatprep.subr.mxu0 0.0
    %772 = vmatpush1.msra.mxu0 0.0
    %773 = vmatprep.subr.mxu0 0.0
    %774 = vmatpush1.msra.mxu0 0.0
    %775 = vmatprep.subr.mxu0 0.0
    %776 = vmatpush1.msra.mxu0 0.0
    %777 = vmatprep.subr.mxu0 0.0
    %778 = vmatpush1.msra.mxu0 0.0
    %779 = vmatprep.subr.mxu0 0.0
    %780 = vmatpush1.msra.mxu0 0.0
    %781 = vmatprep.subr.mxu0 0.0
    %782 = vmatpush1.msra.mxu0 0.0
    %783 = vmatprep.subr.mxu0 0.0
    %784 = vmatpush1.msra.mxu0 0.0
    %785 = vmatprep.subr.mxu0 0.0
    %786 = vmatpush1.msra.mxu0 0.0
    %787 = vmatprep.subr.mxu0 0.0
    %788 = vmatpush1.msra.mxu0 0.0
    %789 = vmatprep.subr.mxu0 0.0
    %790 = vmatpush1.msra.mxu0 0.0
    %791 = vmatprep.subr.mxu0 0.0
    %792 = vmatpush1.msra.mxu0 0.0
    %793 = vmatprep.subr.mxu0 0.0
    %794 = vmatpush1.msra.mxu0 0.0
    %795 = vmatprep.subr.mxu0 0.0
    %796 = vmatpush1.msra.mxu0 0.0
    %797 = vmatprep.subr.mxu0 0.0
    %798 = vmatpush1.msra.mxu0 0.0
    %799 = vmatprep.subr.mxu0 0.0
    %800 = vmatpush1.msra.mxu0 0.0
    %801 = vmatprep.subr.mxu0 0.0
    %802 = vmatpush1.msra.mxu0 0.0
    %803 = vmatprep.subr.mxu0 0.0
    %804 = vmatpush1.msra.mxu0 0.0
    %805 = vmatprep.mubr.f32.mxu0 0.0
    %806 = vmatmul.mubr.f32.gmra.mrb[0].mxu0 %v736
    %v807 = vpop.f32.mrb[0].mxu0
    %v808 = vadd.f32 %v734, %v807
    %v809 = vpop.f32.mrb[0].mxu0
    %810 = vmatprep.mubr.f32.mxu0 0.0
    %811 = vmatmul.mubr.f32.gmra.mrb[0].mxu0 %v739
    %v812 = vpop.f32.mrb[0].mxu0
    %v813 = vadd.f32 %v734, %v812
    %v814 = vpop.f32.mrb[0].mxu0
    %815 = vdwg.mxu0
    %v816 = vmax.f32 %v808, 0.0
    %v817 = vmax.f32 %v813, 0.0
    %v818 = vlaneseq
    %v819 = vshrl.u32 %v818, 7
    %v820 = vsub.s32 4, %v819
    %v821 = vrot.slane %v572, %v820
    %838 = vrot.lane.b32.xlu0 %v581, 32
    %v839 = vpop.permute.xlu0 %838
    %840 = vrot.lane.b32.xlu0 %v582, 32
    %v841 = vpop.permute.xlu0 %840
    %842 = vrot.lane.b32.xlu0 %v583, 32
    %v843 = vpop.permute.xlu0 %842
    %844 = vrot.lane.b32.xlu0 %v584, 32
    %v845 = vpop.permute.xlu0 %844
    %846 = vrot.lane.b32.xlu0 %v585, 32
    %v847 = vpop.permute.xlu0 %846
    %848 = vrot.lane.b32.xlu0 %v586, 32
    %v849 = vpop.permute.xlu0 %848
    %850 = vrot.lane.b32.xlu0 %v587, 32
    %v851 = vpop.permute.xlu0 %850
    %852 = vrot.lane.b32.xlu0 %v588, 32
    %v853 = vpop.permute.xlu0 %852
    %854 = vrot.lane.b32.xlu0 %v589, 32
    %v855 = vpop.permute.xlu0 %854
    %856 = vrot.lane.b32.xlu0 %v590, 32
    %v857 = vpop.permute.xlu0 %856
    %858 = vrot.lane.b32.xlu0 %v591, 32
    %v859 = vpop.permute.xlu0 %858
    %860 = vrot.lane.b32.xlu0 %v592, 32
    %v861 = vpop.permute.xlu0 %860
    %862 = vrot.lane.b32.xlu0 %v593, 32
    %v863 = vpop.permute.xlu0 %862
    %864 = vrot.lane.b32.xlu0 %v594, 32
    %v865 = vpop.permute.xlu0 %864
    %866 = vrot.lane.b32.xlu0 %v595, 32
    %v867 = vpop.permute.xlu0 %866
    %868 = vrot.lane.b32.xlu0 %v596, 32
    %v869 = vpop.permute.xlu0 %868
    %886 = vmatprep.subr.mxu0 0.0
    %887 = vmatpush1.msra.mxu0 %v839
    %888 = vmatprep.subr.mxu0 0.0
    %889 = vmatpush1.msra.mxu0 %v841
    %890 = vmatprep.subr.mxu0 0.0
    %891 = vmatpush1.msra.mxu0 %v843
    %892 = vmatprep.subr.mxu0 0.0
    %893 = vmatpush1.msra.mxu0 %v845
    %894 = vmatprep.subr.mxu0 0.0
    %895 = vmatpush1.msra.mxu0 %v847
    %896 = vmatprep.subr.mxu0 0.0
    %897 = vmatpush1.msra.mxu0 %v849
    %898 = vmatprep.subr.mxu0 0.0
    %899 = vmatpush1.msra.mxu0 %v851
    %900 = vmatprep.subr.mxu0 0.0
    %901 = vmatpush1.msra.mxu0 %v853
    %902 = vmatprep.subr.mxu0 0.0
    %903 = vmatpush1.msra.mxu0 %v855
    %904 = vmatprep.subr.mxu0 0.0
    %905 = vmatpush1.msra.mxu0 %v857
    %906 = vmatprep.subr.mxu0 0.0
    %907 = vmatpush1.msra.mxu0 %v859
    %908 = vmatprep.subr.mxu0 0.0
    %909 = vmatpush1.msra.mxu0 %v861
    %910 = vmatprep.subr.mxu0 0.0
    %911 = vmatpush1.msra.mxu0 %v863
    %912 = vmatprep.subr.mxu0 0.0
    %913 = vmatpush1.msra.mxu0 %v865
    %914 = vmatprep.subr.mxu0 0.0
    %915 = vmatpush1.msra.mxu0 %v867
    %916 = vmatprep.subr.mxu0 0.0
    %917 = vmatpush1.msra.mxu0 %v869
    %918 = vmatprep.subr.mxu0 0.0
    %919 = vmatpush1.msra.mxu0 0.0
    %920 = vmatprep.subr.mxu0 0.0
    %921 = vmatpush1.msra.mxu0 0.0
    %922 = vmatprep.subr.mxu0 0.0
    %923 = vmatpush1.msra.mxu0 0.0
    %924 = vmatprep.subr.mxu0 0.0
    %925 = vmatpush1.msra.mxu0 0.0
    %926 = vmatprep.subr.mxu0 0.0
    %927 = vmatpush1.msra.mxu0 0.0
    %928 = vmatprep.subr.mxu0 0.0
    %929 = vmatpush1.msra.mxu0 0.0
    %930 = vmatprep.subr.mxu0 0.0
    %931 = vmatpush1.msra.mxu0 0.0
    %932 = vmatprep.subr.mxu0 0.0
    %933 = vmatpush1.msra.mxu0 0.0
    %934 = vmatprep.subr.mxu0 0.0
    %935 = vmatpush1.msra.mxu0 0.0
    %936 = vmatprep.subr.mxu0 0.0
    %937 = vmatpush1.msra.mxu0 0.0
    %938 = vmatprep.subr.mxu0 0.0
    %939 = vmatpush1.msra.mxu0 0.0
    %940 = vmatprep.subr.mxu0 0.0
    %941 = vmatpush1.msra.mxu0 0.0
    %942 = vmatprep.subr.mxu0 0.0
    %943 = vmatpush1.msra.mxu0 0.0
    %944 = vmatprep.subr.mxu0 0.0
    %945 = vmatpush1.msra.mxu0 0.0
    %946 = vmatprep.subr.mxu0 0.0
    %947 = vmatpush1.msra.mxu0 0.0
    %948 = vmatprep.subr.mxu0 0.0
    %949 = vmatpush1.msra.mxu0 0.0
    %950 = vmatprep.mubr.f32.mxu0 0.0
    %951 = vmatmul.mubr.f32.gmra.mrb[0].mxu0 %v816
    %v952 = vpop.f32.mrb[0].mxu0
    %v953 = vadd.f32 %v821, %v952
    %v954 = vpop.f32.mrb[0].mxu0
    %955 = vmatprep.mubr.f32.mxu0 0.0
    %956 = vmatmul.mubr.f32.gmra.mrb[0].mxu0 %v817
    %v957 = vpop.f32.mrb[0].mxu0
    %v958 = vadd.f32 %v821, %v957
    %v959 = vpop.f32.mrb[0].mxu0
    %960 = vdwg.mxu0
    %v961 = vadd.f32 %v953, %v729
    %v962 = vadd.f32 %v958, %v730
    %v963 = vsel %vm273, %v961, 0.0
    %964 = vadd.xlane.f32.xlu0 %v963
    %v965 = vpop.xlane.xlu0 %964
    %v966 = vsel %vm273, %v962, 0.0
    %967 = vadd.xlane.f32.xlu0 %v966
    %v968 = vpop.xlane.xlu0 %967
    %v969 = vmul.f32 %v965, %v698
    %v970 = vmul.f32 %v968, %v698
    %v971 = vsub.f32 %v961, %v969
    %v972 = vsub.f32 %v962, %v970
    %v973 = vmul.f32 %v971, %v971
    %v974 = vmul.f32 %v972, %v972
    %v975 = vsel %vm273, %v973, 0.0
    %976 = vadd.xlane.f32.xlu0 %v975
    %v977 = vpop.xlane.xlu0 %976
    %v978 = vsel %vm273, %v974, 0.0
    %979 = vadd.xlane.f32.xlu0 %v978
    %v980 = vpop.xlane.xlu0 %979
    %v981 = vmul.f32 %v977, %v698
    %v982 = vmul.f32 %v980, %v698
    %v983 = vadd.f32 %v981, 1e-05
    %v984 = vadd.f32 %v982, 1e-05
    %v985 = vrsqrt.pop %v983
    %v986 = vrsqrt.pop %v984
    %v987 = vmul.f32 %v971, %v985
    %v988 = vmul.f32 %v972, %v986
    %v989 = vlaneseq
    %v990 = vshrl.u32 %v989, 7
    %v991 = vsub.s32 5, %v990
    %v992 = vrot.slane %v572, %v991
    %v993 = vmul.f32 %v987, %v992
    %v994 = vmul.f32 %v988, %v992
    %v995 = vlaneseq
    %v996 = vshrl.u32 %v995, 7
    %v997 = vsub.s32 6, %v996
    %v998 = vrot.slane %v572, %v997
    %v999 = vadd.f32 %v993, %v998
    %v1000 = vadd.f32 %v994, %v998
    %1001 = vst.msk [vmem:[#allocation11] sm:$0xff] %vm273, %v999
    %1002 = vst.msk [vmem:[#allocation11 + $0x8] sm:$0xff] %vm273, %v1000
    // Predicated region
    $region46: #{tpu_custom_call.1} parent=1 // pred_check
      _
    $region47: #{tpu_custom_call.1} parent=1 // pred_check_branch
      %1004 = sbr.rel (0) target = $region49
    $region48: #{tpu_custom_call.1} parent=1 // pred_region
      %s1006 = ssub.s32 256, 256
      %1007 = vsyncadd [#allocation4], %s1006
      %s1008 = sshll.u32 [#allocation11], 4
      %s1009 = int_to_ptr.vmem [resolvable:$true] %s1008
      %1014 = dma.vmem_to_hbm [thread:$0]  %s1009, 256, %s6, [#allocation4], 128, 128, 8
    $region49: #{tpu_custom_call.1} parent=1 // pred_fallthru
      _
    // Predicated region
    $region50: #{tpu_custom_call.1} parent=1 // pred_check
      _
    $region51: #{tpu_custom_call.1} parent=1 // pred_check_branch
      %1016 = sbr.rel (0) target = $region53
    $region52: #{tpu_custom_call.1} parent=1 // pred_region
      %1017 = dma.done [#allocation4], 256
    $region53: #{tpu_custom_call.1} parent=1 // pred_fallthru
      _
    %1018 = vsyncpa [#allocation3], 1
    %1019 = vsyncpa [#allocation6], 1
    %1020 = vsyncpa [#allocation9], 1
    %1021 = vsyncpa [#allocation4], 1

</llo_original>
